<compile_context>
chip_gen: v6e
topology: v6e:2x2x1
jax: 0.10.0
libtpu: 0.0.40
codegen_flags: <defaults>
</compile_context>

<pallas_src>
import functools

import jax
import jax.numpy as jnp
from jax.experimental import pallas as pl
from jax.experimental.pallas import tpu as pltpu


def _shift_kernel(x_ref, o_ref, *, shift_elems):
    """One block of flattened planes, shape (TC, H*W).

    out[p, j] = 0                    for j <  shift_elems
    out[p, j] = x[p, j - shift_elems] for j >= shift_elems
    """
    rows, hw = o_ref.shape
    if shift_elems <= 0:
        # No shift: straight copy.
        o_ref[...] = x_ref[...]
    elif shift_elems >= hw:
        # Shift >= H: every output plane is entirely zeros.
        o_ref[...] = jnp.zeros((rows, hw), o_ref.dtype)
    else:
        # shift_elems is a Python constant (functools.partial) -> static slices.
        o_ref[:, :shift_elems] = jnp.zeros((rows, shift_elems), o_ref.dtype)
        o_ref[:, shift_elems:] = x_ref[:, : hw - shift_elems]


@functools.partial(jax.jit, static_argnames=("hole_size",))
def super_shift(x, hole_size=1):
    """Pallas TPU implementation of super_shift.forward (NCHW in / NCHW out)."""
    shift = (hole_size + 1) // 2
    N, C, H, W = x.shape
    P = N * C
    HW = H * W
    itemsize = jnp.dtype(x.dtype).itemsize

    # Shift expressed as a flat element offset within each contiguous plane.
    shift_elems = min(shift, H) * W

    # Flatten: (N, C, H, W) -> (P, H*W). Free for a contiguous NCHW array.
    x2 = x.reshape(P, HW)

    # Pick block rows targeting ~2 MiB per block (big contiguous DMAs, amortizes
    # the ~0.35 us/step grid overhead). Second-to-last block dim must be a
    # multiple of 8 or equal the full dim; the last dim is always the full HW.
    target_bytes = 2 * 1024 * 1024
    rows = max(1, target_bytes // (HW * itemsize))
    if rows >= P or P <= 8:
        tc = P                              # one (or few) blocks covering all planes
    else:
        tc = max(8, (min(rows, P) // 8) * 8)  # multiple of 8; ragged edge is fine

    block_bytes = tc * HW * itemsize
    # Explicit VMEM budget: >= 32 MiB, but never above 64 MiB (v7x physical cap).
    # Double-buffered in + out needs ~4x block_bytes; use 5x for slack.
    vmem_limit = int(min(64 * 1024 * 1024, max(32 * 1024 * 1024, 5 * block_bytes)))

    kernel = functools.partial(_shift_kernel, shift_elems=shift_elems)
    out2 = pl.pallas_call(
        kernel,
        out_shape=jax.ShapeDtypeStruct((P, HW), x.dtype),
        grid=(pl.cdiv(P, tc),),
        in_specs=[pl.BlockSpec((tc, HW), lambda i: (i, 0))],
        out_specs=pl.BlockSpec((tc, HW), lambda i: (i, 0)),
        compiler_params=pltpu.CompilerParams(
            dimension_semantics=("parallel",),
            vmem_limit_bytes=vmem_limit,
        ),
    )(x2)

    return out2.reshape(N, C, H, W)


def _reference_super_shift(x, hole_size=1):
    """Pure-JAX reference mirroring the PyTorch code (pad top, crop bottom)."""
    shift = (hole_size + 1) // 2
    N, C, H, W = x.shape
    xp = jnp.pad(x, ((0, 0), (0, 0), (shift, 0), (0, 0)))
    return xp[:, :, :H, :]


if __name__ == "__main__":
    key = jax.random.PRNGKey(0)

    # Main case: matches the module's typical usage.
    x = jax.random.normal(key, (2, 4, 16, 16), dtype=jnp.float32)
    out = jax.block_until_ready(super_shift(x, hole_size=1))
    ref = _reference_super_shift(x, hole_size=1)
    assert out.shape == ref.shape and out.dtype == ref.dtype
    assert jnp.allclose(out, ref), "mismatch vs reference (hole_size=1)"

    # Larger shift on the same shape.
    out3 = jax.block_until_ready(super_shift(x, hole_size=3))
    ref3 = _reference_super_shift(x, hole_size=3)
    assert jnp.allclose(out3, ref3), "mismatch vs reference (hole_size=3)"

    # Non-multiple-of-8 plane count and a different spatial size.
    key2 = jax.random.PRNGKey(1)
    y = jax.random.normal(key2, (1, 3, 8, 16), dtype=jnp.float32)
    outy = jax.block_until_ready(super_shift(y, hole_size=4))
    refy = _reference_super_shift(y, hole_size=4)
    assert jnp.allclose(outy, refy), "mismatch vs reference (hole_size=4)"

    # Shift larger than H (degenerate: all-zero output).
    outz = jax.block_until_ready(super_shift(y, hole_size=20))
    refz = _reference_super_shift(y, hole_size=20)
    assert jnp.allclose(outz, refz), "mismatch vs reference (hole_size=20)"

    print("KERNEL_OK")
</pallas_src>

<mosaic_0001>
module attributes {stable_mosaic.version = 11 : i64} {
  func.func @_shift_kernel(%arg0: i32, %arg1: memref<8x256xf32, #tpu.memory_space<vmem>>, %arg2: memref<8x256xf32, #tpu.memory_space<vmem>>) attributes {dimension_semantics = [#tpu.dimension_semantics<parallel>], iteration_bounds = array<i64: 1>, scalar_prefetch = 0 : i64, scratch_operands = 0 : i64, tpu.core_type = #tpu.core_type<tc>, window_params = [{transform_indices = @transform_0, window_bounds = array<i64: 8, 256>}, {transform_indices = @transform_1, window_bounds = array<i64: 8, 256>}]} {
    %cst = arith.constant 0.000000e+00 : f32
    %0 = vector.broadcast %cst : f32 to vector<8x16xf32>
    %c0 = arith.constant 0 : index
    %c0_0 = arith.constant 0 : index
    %1 = vector.load %arg2[%c0, %c0_0] : memref<8x256xf32, #tpu.memory_space<vmem>>, vector<8x16xf32>
    tpu.vector_store %arg2[%c0, %c0_0], %0 {strides = array<i32>} : memref<8x256xf32, #tpu.memory_space<vmem>>, vector<8x16xf32>,
    %c0_1 = arith.constant 0 : index
    %c0_2 = arith.constant 0 : index
    %2 = vector.load %arg1[%c0_1, %c0_2] : memref<8x256xf32, #tpu.memory_space<vmem>>, vector<8x240xf32>
    %c0_3 = arith.constant 0 : index
    %c16 = arith.constant 16 : index
    %3 = vector.load %arg2[%c0_3, %c16] : memref<8x256xf32, #tpu.memory_space<vmem>>, vector<8x240xf32>
    tpu.vector_store %arg2[%c0_3, %c16], %2 {strides = array<i32>} : memref<8x256xf32, #tpu.memory_space<vmem>>, vector<8x240xf32>,
    return
  }
  func.func @transform_0(%arg0: i32) -> (i32, i32) {
    %c0_i32 = arith.constant 0 : i32
    %c0_i32_0 = arith.constant 0 : i32
    return %arg0, %c0_i32 : i32, i32
  }
  func.func @transform_1(%arg0: i32) -> (i32, i32) {
    %c0_i32 = arith.constant 0 : i32
    %c0_i32_0 = arith.constant 0 : i32
    return %arg0, %c0_i32 : i32, i32
  }
}

</mosaic_0001>

<llo_original>
// kernel: super_shift.1
$region0: #{super_shift.1}
  #allocation0 [shape = 'u32[]', space=smem, size = 0x4, offset = 0x4, fixed_abs, tag = 'smem constant byte address 0x4 - core index']
  #allocation1 [shape = 'u32[144,128]{1,0:T(1,128)}', space=vmem, size = 0x12000, scoped, tag = 'internal scratch']
  %s0 = inlined_call_operand.vmem [shape: f32[8,256], index: 0, kind: input, shape index: {}]
  %s1 = inlined_call_operand.vmem [shape: f32[8,256], index: 1, kind: output, shape index: {}]
  %s2 = sld [smem:[#allocation0]]
  $region14: #{super_shift.1} parent=0
    _
  %s4 = ssub.s32 1, %s2
  %s5 = scalar_select 0, %s4, %s2
  // Predicated region
  $region2: #{super_shift.1} parent=0 // pred_check
    _
  $region3: #{super_shift.1} parent=0 // pred_check_branch
    %7 = sbr.rel (0) target = $region5
  $region4: #{super_shift.1} parent=0 // pred_region
    _
  $region5: #{super_shift.1} parent=0 // pred_fallthru
    _
  %vm8 = vcmask 130048
  %9 = vst.msk [vmem:[%s1] sm:$0xff] %vm8, 0.0
  %v10 = vld [vmem:[%s0] sm:$0xff]
  %v11 = vld [vmem:[%s0 + $0x8] sm:$0xff]
  %14 = vrot.lane.b32.xlu0 %v10, 16
  %v15 = vpop.permute.xlu0 %14
  %16 = vrot.lane.b32.xlu0 %v11, 16
  %v17 = vpop.permute.xlu0 %16
  %v18 = vsel %vm8, %v15, %v17
  %vm21 = vcmask 1047680
  %22 = vst.msk [vmem:[%s1] sm:$0xff] %vm21, %v15
  %23 = vst [vmem:[%s1 + $0x8] sm:$0xff] %v18
  // Predicated region
  $region6: #{super_shift.1} parent=0 // pred_check
    _
  $region7: #{super_shift.1} parent=0 // pred_check_branch
    %25 = sbr.rel (0) target = $region9
  $region8: #{super_shift.1} parent=0 // pred_region
    _
  $region9: #{super_shift.1} parent=0 // pred_fallthru
    _
  // Predicated region
  $region10: #{super_shift.1} parent=0 // pred_check
    _
  $region11: #{super_shift.1} parent=0 // pred_check_branch
    %27 = sbr.rel (0) target = $region13
  $region12: #{super_shift.1} parent=0 // pred_region
    _
  $region13: #{super_shift.1} parent=0 // pred_fallthru
    _

</llo_original>
